<compile_context>
chip_gen: v5e
topology: v5e:2x2
jax: 0.10.0
libtpu: 0.0.40
codegen_flags: <defaults>
</compile_context>

<pallas_src>
import math
import functools

import jax
import jax.numpy as jnp
from jax.experimental import pallas as pl
from jax.experimental.pallas import tpu as pltpu

N_EMBD = 32
N_HEAD = 4
EPS = 1e-5  # PyTorch LayerNorm default eps


def _layernorm(x, w, b):
    mu = jnp.mean(x, axis=-1, keepdims=True)
    xc = x - mu
    var = jnp.mean(xc * xc, axis=-1, keepdims=True)
    return xc * jax.lax.rsqrt(var + EPS) * w + b


def _gelu_exact(x):
    # nn.GELU() default is the exact (erf-based) formulation.
    return 0.5 * x * (1.0 + jax.lax.erf(x * (1.0 / math.sqrt(2.0))))


def st_block_kernel(x_ref, ln1w_ref, ln1b_ref, wqkv_ref, bqkv_ref,
                    wproj_ref, bproj_ref, ln2w_ref, ln2b_ref,
                    w1_ref, b1_ref, w2_ref, b2_ref,
                    o_ref, *, n_head, approx_recip=True):
    f32, bf16 = jnp.float32, jnp.bfloat16

    x = x_ref[...]                                   # (L, D) fp32, one batch element
    L, D = x.shape
    H = n_head
    hd = D // H

    # ---------------- attn(ln1(x)) ----------------
    xn = _layernorm(x, ln1w_ref[...], ln1b_ref[...])
    # Single fused QKV matmul (softmax scale pre-folded into Q columns wrapper-side).
    qkv = jnp.dot(xn.astype(bf16), wqkv_ref[...],
                  preferred_element_type=f32) + bqkv_ref[...]        # (L, 3D)

    def split_heads(t2d):                            # (L, H*hd) -> (H, L, hd)
        return jnp.stack([t2d[:, h * hd:(h + 1) * hd] for h in range(H)], axis=0)

    q = split_heads(qkv[:, 0 * D:1 * D]).astype(bf16)
    k = split_heads(qkv[:, 1 * D:2 * D]).astype(bf16)
    v = split_heads(qkv[:, 2 * D:3 * D]).astype(bf16)

    # TODO(synk): flash-tile this section over KV before scaling L (keep (H,tq,tk)
    # tiles instead of the full (H,L,L) score tensor).
    s = jnp.einsum('hqe,hke->hqk', q, k, preferred_element_type=f32)  # (H, L, L)
    s = s - jnp.max(s, axis=-1, keepdims=True)
    p = jnp.exp(s)
    denom = jnp.sum(p, axis=-1, keepdims=True)
    if approx_recip:
        p = p * pl.reciprocal(denom, approx=True)
    else:
        p = p / denom
    o = jnp.einsum('hqk,hke->hqe', p.astype(bf16), v,
                   preferred_element_type=f32)                        # (H, L, hd)

    # Head recombine (lane concat) + single output projection against original wproj.
    o_cat = jnp.concatenate([o[h] for h in range(H)], axis=-1)        # (L, D)
    attn = jnp.dot(o_cat.astype(bf16), wproj_ref[...],
                   preferred_element_type=f32) + bproj_ref[...]

    x = x + attn                                     # in_residual=True

    # ---------------- x + mlp(ln2(x)) ----------------
    xn2 = _layernorm(x, ln2w_ref[...], ln2b_ref[...])
    h1 = jnp.dot(xn2.astype(bf16), w1_ref[...],
                 preferred_element_type=f32) + b1_ref[...]
    h1 = _gelu_exact(h1)
    h2 = jnp.dot(h1.astype(bf16), w2_ref[...],
                 preferred_element_type=f32) + b2_ref[...]
    # Dropout: identity in eval mode.

    o_ref[...] = (x + h2).astype(o_ref.dtype)        # out_residual=True


def st_block(x, params, n_head=N_HEAD, approx_recip=True):
    (ln1w, ln1b, wqkv, bqkv, wproj, bproj,
     ln2w, ln2b, w1, b1, w2, b2) = params
    B, L, D = x.shape
    H = n_head
    hd = D // H
    f32, bf16 = jnp.float32, jnp.bfloat16

    # ---- wrapper-side layout plumbing (one time, outside the kernel) ----
    # Fold the softmax 1/sqrt(hd) scale into the Q columns of the fused QKV
    # weight and bias (free wrapper-side math; removes an O(H*L*L) kernel mul).
    scale = 1.0 / math.sqrt(hd)
    col_scale = jnp.concatenate([jnp.full((D,), scale, dtype=f32),
                                 jnp.ones((2 * D,), dtype=f32)])
    wqkv_s = (wqkv.astype(f32) * col_scale[None, :]).astype(bf16)           # (D, 3D)
    bqkv_s = (bqkv.reshape(1, 3 * D).astype(f32) * col_scale[None, :])      # (1, 3D)

    args = (
        x.astype(f32),
        ln1w.astype(f32).reshape(1, D), ln1b.astype(f32).reshape(1, D),
        wqkv_s, bqkv_s,
        wproj.astype(bf16), bproj.astype(f32).reshape(1, D),
        ln2w.astype(f32).reshape(1, D), ln2b.astype(f32).reshape(1, D),
        w1.astype(bf16), b1.astype(f32).reshape(1, 4 * D),
        w2.astype(bf16), b2.astype(f32).reshape(1, D),
    )

    const2 = lambda b: (0, 0)  # weights: same block every step -> stay VMEM-resident
    grid_spec = pltpu.PrefetchScalarGridSpec(
        num_scalar_prefetch=0,
        grid=(B,),
        in_specs=[
            pl.BlockSpec((None, L, D), lambda b: (b, 0, 0)),   # x: one sample / step
            pl.BlockSpec((1, D), const2),                      # ln1.weight
            pl.BlockSpec((1, D), const2),                      # ln1.bias
            pl.BlockSpec((D, 3 * D), const2),                  # fused qkv weight (bf16)
            pl.BlockSpec((1, 3 * D), const2),                  # fused qkv bias
            pl.BlockSpec((D, D), const2),                      # attn proj weight (bf16)
            pl.BlockSpec((1, D), const2),                      # attn proj bias
            pl.BlockSpec((1, D), const2),                      # ln2.weight
            pl.BlockSpec((1, D), const2),                      # ln2.bias
            pl.BlockSpec((D, 4 * D), const2),                  # mlp fc1 weight (bf16)
            pl.BlockSpec((1, 4 * D), const2),                  # mlp fc1 bias
            pl.BlockSpec((4 * D, D), const2),                  # mlp fc2 weight (bf16)
            pl.BlockSpec((1, D), const2),                      # mlp fc2 bias
        ],
        out_specs=pl.BlockSpec((None, L, D), lambda b: (b, 0, 0)),
    )

    out = pl.pallas_call(
        functools.partial(st_block_kernel, n_head=H, approx_recip=approx_recip),
        out_shape=jax.ShapeDtypeStruct((B, L, D), f32),
        grid_spec=grid_spec,
        compiler_params=pltpu.CompilerParams(
            dimension_semantics=("parallel",)),   # shard B across TCs on v7x
    )(*args)
    return out


def st_block_ref(x, params, n_head=N_HEAD):
    """Pure-JAX fp32 reference (same math, for correctness check)."""
    (ln1w, ln1b, wqkv, bqkv, wproj, bproj, ln2w, ln2b, w1, b1, w2, b2) = params
    B, L, D = x.shape
    hd = D // n_head

    def ln(v, w, b):
        mu = jnp.mean(v, -1, keepdims=True)
        var = jnp.mean((v - mu) ** 2, -1, keepdims=True)
        return (v - mu) * jax.lax.rsqrt(var + EPS) * w + b

    xn = ln(x, ln1w, ln1b)
    qkv = xn @ wqkv + bqkv
    q, k, v = jnp.split(qkv, 3, axis=-1)
    q = q.reshape(B, L, n_head, hd).transpose(0, 2, 1, 3)
    k = k.reshape(B, L, n_head, hd).transpose(0, 2, 1, 3)
    v = v.reshape(B, L, n_head, hd).transpose(0, 2, 1, 3)
    s = jnp.einsum("bhqd,bhkd->bhqk", q, k) / math.sqrt(hd)
    p = jax.nn.softmax(s, axis=-1)
    o = jnp.einsum("bhqk,bhkd->bhqd", p, v).transpose(0, 2, 1, 3).reshape(B, L, D)
    attn = o @ wproj + bproj
    x = x + attn
    xn2 = ln(x, ln2w, ln2b)
    h1 = jax.nn.gelu(xn2 @ w1 + b1, approximate=False)
    return x + (h1 @ w2 + b2)


if __name__ == "__main__":
    B, L, D, H = 2, 8, N_EMBD, N_HEAD

    key = jax.random.PRNGKey(0)
    ks = jax.random.split(key, 16)

    def nrm(k, shape, scale=0.02):
        return (scale * jax.random.normal(k, shape)).astype(jnp.float32)

    params = [
        (1.0 + 0.01 * jax.random.normal(ks[0], (1, D))).astype(jnp.float32),   # ln1.weight
        nrm(ks[1], (1, D), 0.01),                                              # ln1.bias
        nrm(ks[2], (D, 3 * D)),                                                # attn qkv weight
        nrm(ks[3], (1, 3 * D), 0.01),                                          # attn qkv bias
        nrm(ks[4], (D, D)),                                                    # attn proj weight
        nrm(ks[5], (1, D), 0.01),                                              # attn proj bias
        (1.0 + 0.01 * jax.random.normal(ks[6], (1, D))).astype(jnp.float32),   # ln2.weight
        nrm(ks[7], (1, D), 0.01),                                              # ln2.bias
        nrm(ks[8], (D, 4 * D)),                                                # mlp fc1 weight
        nrm(ks[9], (1, 4 * D), 0.01),                                          # mlp fc1 bias
        nrm(ks[10], (4 * D, D)),                                               # mlp fc2 weight
        nrm(ks[11], (1, D), 0.01),                                             # mlp fc2 bias
    ]

    x = jax.random.normal(ks[12], (B, L, D), dtype=jnp.float32)

    out = st_block(x, params, n_head=H)
    out = jax.block_until_ready(out)

    ref = st_block_ref(x, params, n_head=H)
    assert out.shape == (B, L, D)
    err = jnp.max(jnp.abs(out - ref))
    assert jnp.allclose(out, ref, rtol=1e-2, atol=1e-2), f"max abs diff {err}"

    print("KERNEL_OK")
</pallas_src>

<mosaic_0001>
module attributes {stable_mosaic.version = 11 : i64} {
  func.func @st_block_kernel(%arg0: i32, %arg1: memref<1x8x32xf32, #tpu.memory_space<vmem>>, %arg2: memref<1x32xf32, #tpu.memory_space<vmem>>, %arg3: memref<1x32xf32, #tpu.memory_space<vmem>>, %arg4: memref<32x96xbf16, #tpu.memory_space<vmem>>, %arg5: memref<1x96xf32, #tpu.memory_space<vmem>>, %arg6: memref<32x32xbf16, #tpu.memory_space<vmem>>, %arg7: memref<1x32xf32, #tpu.memory_space<vmem>>, %arg8: memref<1x32xf32, #tpu.memory_space<vmem>>, %arg9: memref<1x32xf32, #tpu.memory_space<vmem>>, %arg10: memref<32x128xbf16, #tpu.memory_space<vmem>>, %arg11: memref<1x128xf32, #tpu.memory_space<vmem>>, %arg12: memref<128x32xbf16, #tpu.memory_space<vmem>>, %arg13: memref<1x32xf32, #tpu.memory_space<vmem>>, %arg14: memref<1x8x32xf32, #tpu.memory_space<vmem>>) attributes {dimension_semantics = [#tpu.dimension_semantics<parallel>], iteration_bounds = array<i64: 2>, scalar_prefetch = 0 : i64, scratch_operands = 0 : i64, tpu.core_type = #tpu.core_type<tc>, window_params = [{transform_indices = @transform_0, window_bounds = array<i64: 1, 8, 32>}, {pipeline_mode = #tpu.pipeline_mode<synchronous>, transform_indices = @transform_1, window_bounds = array<i64: 1, 32>}, {pipeline_mode = #tpu.pipeline_mode<synchronous>, transform_indices = @transform_2, window_bounds = array<i64: 1, 32>}, {pipeline_mode = #tpu.pipeline_mode<synchronous>, transform_indices = @transform_3, window_bounds = array<i64: 32, 96>}, {pipeline_mode = #tpu.pipeline_mode<synchronous>, transform_indices = @transform_4, window_bounds = array<i64: 1, 96>}, {pipeline_mode = #tpu.pipeline_mode<synchronous>, transform_indices = @transform_5, window_bounds = array<i64: 32, 32>}, {pipeline_mode = #tpu.pipeline_mode<synchronous>, transform_indices = @transform_6, window_bounds = array<i64: 1, 32>}, {pipeline_mode = #tpu.pipeline_mode<synchronous>, transform_indices = @transform_7, window_bounds = array<i64: 1, 32>}, {pipeline_mode = #tpu.pipeline_mode<synchronous>, transform_indices = @transform_8, window_bounds = array<i64: 1, 32>}, {pipeline_mode = #tpu.pipeline_mode<synchronous>, transform_indices = @transform_9, window_bounds = array<i64: 32, 128>}, {pipeline_mode = #tpu.pipeline_mode<synchronous>, transform_indices = @transform_10, window_bounds = array<i64: 1, 128>}, {pipeline_mode = #tpu.pipeline_mode<synchronous>, transform_indices = @transform_11, window_bounds = array<i64: 128, 32>}, {pipeline_mode = #tpu.pipeline_mode<synchronous>, transform_indices = @transform_12, window_bounds = array<i64: 1, 32>}, {transform_indices = @transform_13, window_bounds = array<i64: 1, 8, 32>}]} {
    %c0 = arith.constant 0 : index
    %c0_0 = arith.constant 0 : index
    %c0_1 = arith.constant 0 : index
    %0 = vector.load %arg1[%c0, %c0_0, %c0_1] : memref<1x8x32xf32, #tpu.memory_space<vmem>>, vector<1x8x32xf32>
    %1 = vector.shape_cast %0 : vector<1x8x32xf32> to vector<8x32xf32>
    %c0_2 = arith.constant 0 : index
    %c0_3 = arith.constant 0 : index
    %2 = vector.load %arg2[%c0_2, %c0_3] : memref<1x32xf32, #tpu.memory_space<vmem>>, vector<1x32xf32>
    %c0_4 = arith.constant 0 : index
    %c0_5 = arith.constant 0 : index
    %3 = vector.load %arg3[%c0_4, %c0_5] : memref<1x32xf32, #tpu.memory_space<vmem>>, vector<1x32xf32>
    %cst = arith.constant dense<0.000000e+00> : vector<8xf32>
    %4 = vector.multi_reduction <add>, %1, %cst [1] : vector<8x32xf32> to vector<8xf32>
    %5 = vector.shape_cast %4 : vector<8xf32> to vector<8x1xf32>
    %cst_6 = arith.constant 3.200000e+01 : f32
    %6 = vector.broadcast %cst_6 : f32 to vector<8x1xf32>
    %7 = arith.divf %5, %6 : vector<8x1xf32>
    %8 = vector.broadcast %7 : vector<8x1xf32> to vector<8x32xf32>
    %9 = arith.subf %1, %8 : vector<8x32xf32>
    %10 = arith.mulf %9, %9 : vector<8x32xf32>
    %cst_7 = arith.constant dense<0.000000e+00> : vector<8xf32>
    %11 = vector.multi_reduction <add>, %10, %cst_7 [1] : vector<8x32xf32> to vector<8xf32>
    %12 = vector.shape_cast %11 : vector<8xf32> to vector<8x1xf32>
    %cst_8 = arith.constant 3.200000e+01 : f32
    %13 = vector.broadcast %cst_8 : f32 to vector<8x1xf32>
    %14 = arith.divf %12, %13 : vector<8x1xf32>
    %cst_9 = arith.constant 9.99999974E-6 : f32
    %15 = vector.broadcast %cst_9 : f32 to vector<8x1xf32>
    %16 = arith.addf %14, %15 : vector<8x1xf32>
    %17 = math.rsqrt %16 : vector<8x1xf32>
    %18 = vector.broadcast %17 : vector<8x1xf32> to vector<8x32xf32>
    %19 = arith.mulf %9, %18 : vector<8x32xf32>
    %20 = vector.broadcast %2 : vector<1x32xf32> to vector<8x32xf32>
    %21 = arith.mulf %19, %20 : vector<8x32xf32>
    %22 = vector.broadcast %3 : vector<1x32xf32> to vector<8x32xf32>
    %23 = arith.addf %21, %22 : vector<8x32xf32>
    %24 = arith.truncf %23 : vector<8x32xf32> to vector<8x32xbf16>
    %c0_10 = arith.constant 0 : index
    %c0_11 = arith.constant 0 : index
    %25 = vector.load %arg4[%c0_10, %c0_11] : memref<32x96xbf16, #tpu.memory_space<vmem>>, vector<32x96xbf16>
    %cst_12 = arith.constant dense<0.000000e+00> : vector<8x96xf32>
    %26 = tpu.matmul %24, %25, %cst_12 {dimension_numbers = #tpu.dot_dimension_numbers<[1], [0], [0], [1], [0, 0, 1, 1], [], []>} : vector<8x32xbf16>, vector<32x96xbf16>, vector<8x96xf32> -> vector<8x96xf32>
    %c0_13 = arith.constant 0 : index
    %c0_14 = arith.constant 0 : index
    %27 = vector.load %arg5[%c0_13, %c0_14] : memref<1x96xf32, #tpu.memory_space<vmem>>, vector<1x96xf32>
    %28 = vector.broadcast %27 : vector<1x96xf32> to vector<8x96xf32>
    %29 = arith.addf %26, %28 : vector<8x96xf32>
    %30 = vector.extract_strided_slice %29 {offsets = [0, 0], sizes = [8, 32], strides = [1, 1]} : vector<8x96xf32> to vector<8x32xf32>
    %31 = vector.extract_strided_slice %30 {offsets = [0, 0], sizes = [8, 8], strides = [1, 1]} : vector<8x32xf32> to vector<8x8xf32>
    %32 = vector.extract_strided_slice %30 {offsets = [0, 8], sizes = [8, 8], strides = [1, 1]} : vector<8x32xf32> to vector<8x8xf32>
    %33 = vector.extract_strided_slice %30 {offsets = [0, 16], sizes = [8, 8], strides = [1, 1]} : vector<8x32xf32> to vector<8x8xf32>
    %34 = vector.extract_strided_slice %30 {offsets = [0, 24], sizes = [8, 8], strides = [1, 1]} : vector<8x32xf32> to vector<8x8xf32>
    %35 = vector.shape_cast %31 : vector<8x8xf32> to vector<1x8x8xf32>
    %36 = vector.shape_cast %32 : vector<8x8xf32> to vector<1x8x8xf32>
    %37 = vector.shape_cast %33 : vector<8x8xf32> to vector<1x8x8xf32>
    %38 = vector.shape_cast %34 : vector<8x8xf32> to vector<1x8x8xf32>
    %39 = tpu.concatenate %35, %36, %37, %38 in 0 : vector<1x8x8xf32>, vector<1x8x8xf32>, vector<1x8x8xf32>, vector<1x8x8xf32> -> vector<4x8x8xf32>
    %40 = arith.truncf %39 : vector<4x8x8xf32> to vector<4x8x8xbf16>
    %41 = vector.extract_strided_slice %29 {offsets = [0, 32], sizes = [8, 32], strides = [1, 1]} : vector<8x96xf32> to vector<8x32xf32>
    %42 = vector.extract_strided_slice %41 {offsets = [0, 0], sizes = [8, 8], strides = [1, 1]} : vector<8x32xf32> to vector<8x8xf32>
    %43 = vector.extract_strided_slice %41 {offsets = [0, 8], sizes = [8, 8], strides = [1, 1]} : vector<8x32xf32> to vector<8x8xf32>
    %44 = vector.extract_strided_slice %41 {offsets = [0, 16], sizes = [8, 8], strides = [1, 1]} : vector<8x32xf32> to vector<8x8xf32>
    %45 = vector.extract_strided_slice %41 {offsets = [0, 24], sizes = [8, 8], strides = [1, 1]} : vector<8x32xf32> to vector<8x8xf32>
    %46 = vector.shape_cast %42 : vector<8x8xf32> to vector<1x8x8xf32>
    %47 = vector.shape_cast %43 : vector<8x8xf32> to vector<1x8x8xf32>
    %48 = vector.shape_cast %44 : vector<8x8xf32> to vector<1x8x8xf32>
    %49 = vector.shape_cast %45 : vector<8x8xf32> to vector<1x8x8xf32>
    %50 = tpu.concatenate %46, %47, %48, %49 in 0 : vector<1x8x8xf32>, vector<1x8x8xf32>, vector<1x8x8xf32>, vector<1x8x8xf32> -> vector<4x8x8xf32>
    %51 = arith.truncf %50 : vector<4x8x8xf32> to vector<4x8x8xbf16>
    %52 = vector.extract_strided_slice %29 {offsets = [0, 64], sizes = [8, 32], strides = [1, 1]} : vector<8x96xf32> to vector<8x32xf32>
    %53 = vector.extract_strided_slice %52 {offsets = [0, 0], sizes = [8, 8], strides = [1, 1]} : vector<8x32xf32> to vector<8x8xf32>
    %54 = vector.extract_strided_slice %52 {offsets = [0, 8], sizes = [8, 8], strides = [1, 1]} : vector<8x32xf32> to vector<8x8xf32>
    %55 = vector.extract_strided_slice %52 {offsets = [0, 16], sizes = [8, 8], strides = [1, 1]} : vector<8x32xf32> to vector<8x8xf32>
    %56 = vector.extract_strided_slice %52 {offsets = [0, 24], sizes = [8, 8], strides = [1, 1]} : vector<8x32xf32> to vector<8x8xf32>
    %57 = vector.shape_cast %53 : vector<8x8xf32> to vector<1x8x8xf32>
    %58 = vector.shape_cast %54 : vector<8x8xf32> to vector<1x8x8xf32>
    %59 = vector.shape_cast %55 : vector<8x8xf32> to vector<1x8x8xf32>
    %60 = vector.shape_cast %56 : vector<8x8xf32> to vector<1x8x8xf32>
    %61 = tpu.concatenate %57, %58, %59, %60 in 0 : vector<1x8x8xf32>, vector<1x8x8xf32>, vector<1x8x8xf32>, vector<1x8x8xf32> -> vector<4x8x8xf32>
    %62 = arith.truncf %61 : vector<4x8x8xf32> to vector<4x8x8xbf16>
    "tpu.trace_start"() <{level = 10 : i32, message = "hqe,hke->hqk"}> : () -> ()
    %cst_15 = arith.constant dense<0.000000e+00> : vector<4x8x8xf32>
    %63 = tpu.matmul %40, %51, %cst_15 {dimension_numbers = #tpu.dot_dimension_numbers<[2], [2], [1], [1], [0, 0, 0, 1, 1, 1], [0], [0]>} : vector<4x8x8xbf16>, vector<4x8x8xbf16>, vector<4x8x8xf32> -> vector<4x8x8xf32>
    "tpu.trace_stop"() : () -> ()
    %cst_16 = arith.constant dense<0xFF800000> : vector<4x8xf32>
    %64 = vector.multi_reduction <maximumf>, %63, %cst_16 [2] : vector<4x8x8xf32> to vector<4x8xf32>
    %65 = vector.shape_cast %64 : vector<4x8xf32> to vector<4x8x1xf32>
    %66 = vector.broadcast %65 : vector<4x8x1xf32> to vector<4x8x8xf32>
    %67 = arith.subf %63, %66 : vector<4x8x8xf32>
    %68 = math.exp %67 : vector<4x8x8xf32>
    %cst_17 = arith.constant dense<0.000000e+00> : vector<4x8xf32>
    %69 = vector.multi_reduction <add>, %68, %cst_17 [2] : vector<4x8x8xf32> to vector<4x8xf32>
    %70 = vector.shape_cast %69 : vector<4x8xf32> to vector<4x8x1xf32>
    %71 = tpu.reciprocal %70 {approx = true} : vector<4x8x1xf32> -> vector<4x8x1xf32>
    %72 = vector.broadcast %71 : vector<4x8x1xf32> to vector<4x8x8xf32>
    %73 = arith.mulf %68, %72 : vector<4x8x8xf32>
    %74 = arith.truncf %73 : vector<4x8x8xf32> to vector<4x8x8xbf16>
    "tpu.trace_start"() <{level = 10 : i32, message = "hqk,hke->hqe"}> : () -> ()
    %cst_18 = arith.constant dense<0.000000e+00> : vector<4x8x8xf32>
    %75 = tpu.matmul %74, %62, %cst_18 {dimension_numbers = #tpu.dot_dimension_numbers<[2], [1], [1], [2], [0, 0, 0, 1, 1, 2], [0], [0]>} : vector<4x8x8xbf16>, vector<4x8x8xbf16>, vector<4x8x8xf32> -> vector<4x8x8xf32>
    "tpu.trace_stop"() : () -> ()
    %76 = vector.extract_strided_slice %75 {offsets = [0, 0, 0], sizes = [1, 8, 8], strides = [1, 1, 1]} : vector<4x8x8xf32> to vector<1x8x8xf32>
    %77 = vector.shape_cast %76 : vector<1x8x8xf32> to vector<8x8xf32>
    %78 = vector.extract_strided_slice %75 {offsets = [1, 0, 0], sizes = [1, 8, 8], strides = [1, 1, 1]} : vector<4x8x8xf32> to vector<1x8x8xf32>
    %79 = vector.shape_cast %78 : vector<1x8x8xf32> to vector<8x8xf32>
    %80 = vector.extract_strided_slice %75 {offsets = [2, 0, 0], sizes = [1, 8, 8], strides = [1, 1, 1]} : vector<4x8x8xf32> to vector<1x8x8xf32>
    %81 = vector.shape_cast %80 : vector<1x8x8xf32> to vector<8x8xf32>
    %82 = vector.extract_strided_slice %75 {offsets = [3, 0, 0], sizes = [1, 8, 8], strides = [1, 1, 1]} : vector<4x8x8xf32> to vector<1x8x8xf32>
    %83 = vector.shape_cast %82 : vector<1x8x8xf32> to vector<8x8xf32>
    %84 = tpu.concatenate %77, %79, %81, %83 in 1 : vector<8x8xf32>, vector<8x8xf32>, vector<8x8xf32>, vector<8x8xf32> -> vector<8x32xf32>
    %85 = arith.truncf %84 : vector<8x32xf32> to vector<8x32xbf16>
    %c0_19 = arith.constant 0 : index
    %c0_20 = arith.constant 0 : index
    %86 = vector.load %arg6[%c0_19, %c0_20] : memref<32x32xbf16, #tpu.memory_space<vmem>>, vector<32x32xbf16>
    %cst_21 = arith.constant dense<0.000000e+00> : vector<8x32xf32>
    %87 = tpu.matmul %85, %86, %cst_21 {dimension_numbers = #tpu.dot_dimension_numbers<[1], [0], [0], [1], [0, 0, 1, 1], [], []>} : vector<8x32xbf16>, vector<32x32xbf16>, vector<8x32xf32> -> vector<8x32xf32>
    %c0_22 = arith.constant 0 : index
    %c0_23 = arith.constant 0 : index
    %88 = vector.load %arg7[%c0_22, %c0_23] : memref<1x32xf32, #tpu.memory_space<vmem>>, vector<1x32xf32>
    %89 = vector.broadcast %88 : vector<1x32xf32> to vector<8x32xf32>
    %90 = arith.addf %87, %89 : vector<8x32xf32>
    %91 = arith.addf %1, %90 : vector<8x32xf32>
    %c0_24 = arith.constant 0 : index
    %c0_25 = arith.constant 0 : index
    %92 = vector.load %arg8[%c0_24, %c0_25] : memref<1x32xf32, #tpu.memory_space<vmem>>, vector<1x32xf32>
    %c0_26 = arith.constant 0 : index
    %c0_27 = arith.constant 0 : index
    %93 = vector.load %arg9[%c0_26, %c0_27] : memref<1x32xf32, #tpu.memory_space<vmem>>, vector<1x32xf32>
    %cst_28 = arith.constant dense<0.000000e+00> : vector<8xf32>
    %94 = vector.multi_reduction <add>, %91, %cst_28 [1] : vector<8x32xf32> to vector<8xf32>
    %95 = vector.shape_cast %94 : vector<8xf32> to vector<8x1xf32>
    %cst_29 = arith.constant 3.200000e+01 : f32
    %96 = vector.broadcast %cst_29 : f32 to vector<8x1xf32>
    %97 = arith.divf %95, %96 : vector<8x1xf32>
    %98 = vector.broadcast %97 : vector<8x1xf32> to vector<8x32xf32>
    %99 = arith.subf %91, %98 : vector<8x32xf32>
    %100 = arith.mulf %99, %99 : vector<8x32xf32>
    %cst_30 = arith.constant dense<0.000000e+00> : vector<8xf32>
    %101 = vector.multi_reduction <add>, %100, %cst_30 [1] : vector<8x32xf32> to vector<8xf32>
    %102 = vector.shape_cast %101 : vector<8xf32> to vector<8x1xf32>
    %cst_31 = arith.constant 3.200000e+01 : f32
    %103 = vector.broadcast %cst_31 : f32 to vector<8x1xf32>
    %104 = arith.divf %102, %103 : vector<8x1xf32>
    %cst_32 = arith.constant 9.99999974E-6 : f32
    %105 = vector.broadcast %cst_32 : f32 to vector<8x1xf32>
    %106 = arith.addf %104, %105 : vector<8x1xf32>
    %107 = math.rsqrt %106 : vector<8x1xf32>
    %108 = vector.broadcast %107 : vector<8x1xf32> to vector<8x32xf32>
    %109 = arith.mulf %99, %108 : vector<8x32xf32>
    %110 = vector.broadcast %92 : vector<1x32xf32> to vector<8x32xf32>
    %111 = arith.mulf %109, %110 : vector<8x32xf32>
    %112 = vector.broadcast %93 : vector<1x32xf32> to vector<8x32xf32>
    %113 = arith.addf %111, %112 : vector<8x32xf32>
    %114 = arith.truncf %113 : vector<8x32xf32> to vector<8x32xbf16>
    %c0_33 = arith.constant 0 : index
    %c0_34 = arith.constant 0 : index
    %115 = vector.load %arg10[%c0_33, %c0_34] : memref<32x128xbf16, #tpu.memory_space<vmem>>, vector<32x128xbf16>
    %cst_35 = arith.constant dense<0.000000e+00> : vector<8x128xf32>
    %116 = tpu.matmul %114, %115, %cst_35 {dimension_numbers = #tpu.dot_dimension_numbers<[1], [0], [0], [1], [0, 0, 1, 1], [], []>} : vector<8x32xbf16>, vector<32x128xbf16>, vector<8x128xf32> -> vector<8x128xf32>
    %c0_36 = arith.constant 0 : index
    %c0_37 = arith.constant 0 : index
    %117 = vector.load %arg11[%c0_36, %c0_37] : memref<1x128xf32, #tpu.memory_space<vmem>>, vector<1x128xf32>
    %118 = vector.broadcast %117 : vector<1x128xf32> to vector<8x128xf32>
    %119 = arith.addf %116, %118 : vector<8x128xf32>
    %cst_38 = arith.constant 5.000000e-01 : f32
    %120 = vector.broadcast %cst_38 : f32 to vector<8x128xf32>
    %121 = arith.mulf %120, %119 : vector<8x128xf32>
    %cst_39 = arith.constant 0.707106769 : f32
    %122 = vector.broadcast %cst_39 : f32 to vector<8x128xf32>
    %123 = arith.mulf %119, %122 : vector<8x128xf32>
    %124 = math.erf %123 : vector<8x128xf32>
    %cst_40 = arith.constant 1.000000e+00 : f32
    %125 = vector.broadcast %cst_40 : f32 to vector<8x128xf32>
    %126 = arith.addf %125, %124 : vector<8x128xf32>
    %127 = arith.mulf %121, %126 : vector<8x128xf32>
    %128 = arith.truncf %127 : vector<8x128xf32> to vector<8x128xbf16>
    %c0_41 = arith.constant 0 : index
    %c0_42 = arith.constant 0 : index
    %129 = vector.load %arg12[%c0_41, %c0_42] : memref<128x32xbf16, #tpu.memory_space<vmem>>, vector<128x32xbf16>
    %cst_43 = arith.constant dense<0.000000e+00> : vector<8x32xf32>
    %130 = tpu.matmul %128, %129, %cst_43 {dimension_numbers = #tpu.dot_dimension_numbers<[1], [0], [0], [1], [0, 0, 1, 1], [], []>} : vector<8x128xbf16>, vector<128x32xbf16>, vector<8x32xf32> -> vector<8x32xf32>
    %c0_44 = arith.constant 0 : index
    %c0_45 = arith.constant 0 : index
    %131 = vector.load %arg13[%c0_44, %c0_45] : memref<1x32xf32, #tpu.memory_space<vmem>>, vector<1x32xf32>
    %132 = vector.broadcast %131 : vector<1x32xf32> to vector<8x32xf32>
    %133 = arith.addf %130, %132 : vector<8x32xf32>
    %134 = arith.addf %91, %133 : vector<8x32xf32>
    %c0_46 = arith.constant 0 : index
    %c0_47 = arith.constant 0 : index
    %c0_48 = arith.constant 0 : index
    %135 = vector.load %arg14[%c0_46, %c0_47, %c0_48] : memref<1x8x32xf32, #tpu.memory_space<vmem>>, vector<1x8x32xf32>
    %136 = vector.shape_cast %135 : vector<1x8x32xf32> to vector<8x32xf32>
    %137 = vector.shape_cast %134 : vector<8x32xf32> to vector<1x8x32xf32>
    tpu.vector_store %arg14[%c0_46, %c0_47, %c0_48], %137 {strides = array<i32>} : memref<1x8x32xf32, #tpu.memory_space<vmem>>, vector<1x8x32xf32>,
    return
  }
  func.func @transform_0(%arg0: i32) -> (i32, i32, i32) {
    %c0_i32 = arith.constant 0 : i32
    %c0_i32_0 = arith.constant 0 : i32
    %c0_i32_1 = arith.constant 0 : i32
    return %arg0, %c0_i32, %c0_i32_0 : i32, i32, i32
  }
  func.func @transform_1(%arg0: i32) -> (i32, i32) {
    %c0_i32 = arith.constant 0 : i32
    %c0_i32_0 = arith.constant 0 : i32
    %c0_i32_1 = arith.constant 0 : i32
    return %c0_i32, %c0_i32_0 : i32, i32
  }
  func.func @transform_2(%arg0: i32) -> (i32, i32) {
    %c0_i32 = arith.constant 0 : i32
    %c0_i32_0 = arith.constant 0 : i32
    %c0_i32_1 = arith.constant 0 : i32
    return %c0_i32, %c0_i32_0 : i32, i32
  }
  func.func @transform_3(%arg0: i32) -> (i32, i32) {
    %c0_i32 = arith.constant 0 : i32
    %c0_i32_0 = arith.constant 0 : i32
    %c0_i32_1 = arith.constant 0 : i32
    return %c0_i32, %c0_i32_0 : i32, i32
  }
  func.func @transform_4(%arg0: i32) -> (i32, i32) {
    %c0_i32 = arith.constant 0 : i32
    %c0_i32_0 = arith.constant 0 : i32
    %c0_i32_1 = arith.constant 0 : i32
    return %c0_i32, %c0_i32_0 : i32, i32
  }
  func.func @transform_5(%arg0: i32) -> (i32, i32) {
    %c0_i32 = arith.constant 0 : i32
    %c0_i32_0 = arith.constant 0 : i32
    %c0_i32_1 = arith.constant 0 : i32
    return %c0_i32, %c0_i32_0 : i32, i32
  }
  func.func @transform_6(%arg0: i32) -> (i32, i32) {
    %c0_i32 = arith.constant 0 : i32
    %c0_i32_0 = arith.constant 0 : i32
    %c0_i32_1 = arith.constant 0 : i32
    return %c0_i32, %c0_i32_0 : i32, i32
  }
  func.func @transform_7(%arg0: i32) -> (i32, i32) {
    %c0_i32 = arith.constant 0 : i32
    %c0_i32_0 = arith.constant 0 : i32
    %c0_i32_1 = arith.constant 0 : i32
    return %c0_i32, %c0_i32_0 : i32, i32
  }
  func.func @transform_8(%arg0: i32) -> (i32, i32) {
    %c0_i32 = arith.constant 0 : i32
    %c0_i32_0 = arith.constant 0 : i32
    %c0_i32_1 = arith.constant 0 : i32
    return %c0_i32, %c0_i32_0 : i32, i32
  }
  func.func @transform_9(%arg0: i32) -> (i32, i32) {
    %c0_i32 = arith.constant 0 : i32
    %c0_i32_0 = arith.constant 0 : i32
    %c0_i32_1 = arith.constant 0 : i32
    return %c0_i32, %c0_i32_0 : i32, i32
  }
  func.func @transform_10(%arg0: i32) -> (i32, i32) {
    %c0_i32 = arith.constant 0 : i32
    %c0_i32_0 = arith.constant 0 : i32
    %c0_i32_1 = arith.constant 0 : i32
    return %c0_i32, %c0_i32_0 : i32, i32
  }
  func.func @transform_11(%arg0: i32) -> (i32, i32) {
    %c0_i32 = arith.constant 0 : i32
    %c0_i32_0 = arith.constant 0 : i32
    %c0_i32_1 = arith.constant 0 : i32
    return %c0_i32, %c0_i32_0 : i32, i32
  }
  func.func @transform_12(%arg0: i32) -> (i32, i32) {
    %c0_i32 = arith.constant 0 : i32
    %c0_i32_0 = arith.constant 0 : i32
    %c0_i32_1 = arith.constant 0 : i32
    return %c0_i32, %c0_i32_0 : i32, i32
  }
  func.func @transform_13(%arg0: i32) -> (i32, i32, i32) {
    %c0_i32 = arith.constant 0 : i32
    %c0_i32_0 = arith.constant 0 : i32
    %c0_i32_1 = arith.constant 0 : i32
    return %arg0, %c0_i32, %c0_i32_0 : i32, i32, i32
  }
}

</mosaic_0001>

<llo_original>
// kernel: tpu_custom_call.1
$region0: #{tpu_custom_call.1}
  #allocation0 [shape = 'u32[]', space=smem, size = 0x4, offset = 0x4, fixed_abs, tag = 'smem constant byte address 0x4 - core index']
  #allocation1 [shape = 'u32[72,128]{1,0:T(1,128)}', space=vmem, size = 0x9000, scoped, tag = 'internal scratch']
  %s0 = inlined_call_operand.vmem [shape: f32[2,8,32], index: 0, kind: input, shape index: {}]
  %s1 = inlined_call_operand.vmem [shape: f32[1,32], index: 1, kind: input, shape index: {}]
  %s2 = inlined_call_operand.vmem [shape: f32[1,32], index: 2, kind: input, shape index: {}]
  %s3 = inlined_call_operand.vmem [shape: bf16[32,96], index: 3, kind: input, shape index: {}]
  %s4 = inlined_call_operand.vmem [shape: f32[1,96], index: 4, kind: input, shape index: {}]
  %s5 = inlined_call_operand.vmem [shape: bf16[32,32], index: 5, kind: input, shape index: {}]
  %s6 = inlined_call_operand.vmem [shape: f32[1,32], index: 6, kind: input, shape index: {}]
  %s7 = inlined_call_operand.vmem [shape: f32[1,32], index: 7, kind: input, shape index: {}]
  %s8 = inlined_call_operand.vmem [shape: f32[1,32], index: 8, kind: input, shape index: {}]
  %s9 = inlined_call_operand.vmem [shape: bf16[32,128], index: 9, kind: input, shape index: {}]
  %s10 = inlined_call_operand.vmem [shape: f32[1,128], index: 10, kind: input, shape index: {}]
  %s11 = inlined_call_operand.vmem [shape: bf16[128,32], index: 11, kind: input, shape index: {}]
  %s12 = inlined_call_operand.vmem [shape: f32[1,32], index: 12, kind: input, shape index: {}]
  %s13 = inlined_call_operand.hbm [shape: f32[2,8,32], index: 13, kind: output, shape index: {}]
  %s14 = sld [smem:[#allocation0]]
  $region85: #{tpu_custom_call.1} parent=0
    _
  %s16 = ssub.s32 1, %s14
  %s17 = scalar_select 0, %s16, %s14
  $region1: #{tpu_custom_call.1} parent=0
    #allocation2 [shape = 'u8[8192]{0}', space=vmem, size = 0x2000, scoped, tag = 'output window, operand 0']
    #allocation3 [shape = 's32[2]{0}', space=sflag, size = 0x8, scoped, tag = 'scoped memory for tpu_custom_call.1']
    %18 = vsyncpa [#allocation3], 0
    %s19 = scalar_lea.sflag [#allocation3], 1
    %20 = vsyncpa %s19, 0
    loop: start=0, step=1, limit=4
    $region2: #{tpu_custom_call.1} parent=1 // loop_pre_header
      _
    $region3: #{tpu_custom_call.1} parent=1 // loop_header
      %s22 = sphi 0, %s26
      %p23 = scmp.ge.s32.totalorder %s22, 4
      %s32 = sphi 0, %s34
      %s35 = sphi 0, %s32
      %s36 = sphi 0, %s35
      %s52 = sphi 0, %s36
      %s56 = sphi 0, %s56
      %s58 = sphi 0, %s56
      %s59 = sphi 0, %s58
      %s73 = sphi 0, %s59
      %s77 = sphi 0, %s77
      %s79 = sphi 0, %s77
      %s80 = sphi 0, %s79
      %s94 = sphi 0, %s80
      %s98 = sphi 0, %s98
      %s100 = sphi 0, %s98
      %s101 = sphi 0, %s100
      %s115 = sphi 0, %s101
      %s119 = sphi 0, %s119
      %s121 = sphi 0, %s119
      %s122 = sphi 0, %s121
      %s136 = sphi 0, %s122
      %s140 = sphi 0, %s140
      %s142 = sphi 0, %s140
      %s143 = sphi 0, %s142
      %s157 = sphi 0, %s143
      %s161 = sphi 0, %s161
      %s163 = sphi 0, %s161
      %s164 = sphi 0, %s163
      %s178 = sphi 0, %s164
      %s182 = sphi 0, %s182
      %s184 = sphi 0, %s182
      %s185 = sphi 0, %s184
      %s199 = sphi 0, %s185
      %s203 = sphi 0, %s203
      %s205 = sphi 0, %s203
      %s206 = sphi 0, %s205
      %s220 = sphi 0, %s206
      %s224 = sphi 0, %s224
      %s226 = sphi 0, %s224
      %s227 = sphi 0, %s226
      %s241 = sphi 0, %s227
      %s245 = sphi 0, %s245
      %s247 = sphi 0, %s245
      %s248 = sphi 0, %s247
      %s262 = sphi 0, %s248
      %s266 = sphi 0, %s266
      %s268 = sphi 0, %s266
      %s269 = sphi 0, %s268
      %s283 = sphi 0, %s269
      %s287 = sphi 0, %s287
      %s289 = sphi 0, %s287
      %s290 = sphi 0, %s289
      %s304 = sphi 0, %s290
      %s310 = sphi 0, %s312
      %s313 = sphi 0, %s310
      %s314 = sphi 0, %s313
      %s330 = sphi 0, %s314
    $region4: #{tpu_custom_call.1} parent=1 // loop_header_branch
      %25 = sbr.rel (%p23) target = $region8
    $region5: #{tpu_custom_call.1} parent=1 // loop_body
      %s27 = ssub.s32 %s22, 1
      %s28 = ssub.s32 %s22, 2
      %s29 = sadd.s32 %s22, 1
      %s30 = ssub.s32 %s22, %s29
      %p31 = scmp.eq.s32.totalorder %s30, 0
      %s33 = sadd.s32 %s32, 1
      %s34 = scalar_select %p31, %s32, %s33
      %p37 = pneg %p31
      %p38 = scmp.eq.s32.totalorder %s22, 1
      %p39 = por %p37, %p38
      %p40 = scmp.ne.s32.totalorder %s32, %s35
      %p41 = scmp.eq.s32.totalorder %s22, 0
      %p42 = por %p40, %p41
      %p43 = scmp.ne.s32.totalorder %s32, %s35
      %p44 = scmp.eq.s32.totalorder %s27, 1
      %p45 = por %p43, %p44
      %p46 = scmp.ne.s32.totalorder %s35, %s36
      %p47 = scmp.eq.s32.totalorder %s27, 0
      %p48 = por %p46, %p47
      %p49 = scmp.ne.s32.totalorder %s35, %s36
      %p50 = scmp.eq.s32.totalorder %s28, 1
      %p51 = por %p49, %p50
      %p53 = scmp.ne.s32.totalorder %s36, %s52
      %p54 = scmp.eq.s32.totalorder %s28, 0
      %p55 = por %p53, %p54
      %s57 = sadd.s32 %s56, 1
      %p60 = scmp.eq.s32.totalorder %s22, 1
      %p61 = scmp.ne.s32.totalorder %s56, %s58
      %p62 = scmp.eq.s32.totalorder %s22, 0
      %p63 = por %p61, %p62
      %p64 = scmp.ne.s32.totalorder %s56, %s58
      %p65 = scmp.eq.s32.totalorder %s27, 1
      %p66 = por %p64, %p65
      %p67 = scmp.ne.s32.totalorder %s58, %s59
      %p68 = scmp.eq.s32.totalorder %s27, 0
      %p69 = por %p67, %p68
      %p70 = scmp.ne.s32.totalorder %s58, %s59
      %p71 = scmp.eq.s32.totalorder %s28, 1
      %p72 = por %p70, %p71
      %p74 = scmp.ne.s32.totalorder %s59, %s73
      %p75 = scmp.eq.s32.totalorder %s28, 0
      %p76 = por %p74, %p75
      %s78 = sadd.s32 %s77, 1
      %p81 = scmp.eq.s32.totalorder %s22, 1
      %p82 = scmp.ne.s32.totalorder %s77, %s79
      %p83 = scmp.eq.s32.totalorder %s22, 0
      %p84 = por %p82, %p83
      %p85 = scmp.ne.s32.totalorder %s77, %s79
      %p86 = scmp.eq.s32.totalorder %s27, 1
      %p87 = por %p85, %p86
      %p88 = scmp.ne.s32.totalorder %s79, %s80
      %p89 = scmp.eq.s32.totalorder %s27, 0
      %p90 = por %p88, %p89
      %p91 = scmp.ne.s32.totalorder %s79, %s80
      %p92 = scmp.eq.s32.totalorder %s28, 1
      %p93 = por %p91, %p92
      %p95 = scmp.ne.s32.totalorder %s80, %s94
      %p96 = scmp.eq.s32.totalorder %s28, 0
      %p97 = por %p95, %p96
      %s99 = sadd.s32 %s98, 1
      %p102 = scmp.eq.s32.totalorder %s22, 1
      %p103 = scmp.ne.s32.totalorder %s98, %s100
      %p104 = scmp.eq.s32.totalorder %s22, 0
      %p105 = por %p103, %p104
      %p106 = scmp.ne.s32.totalorder %s98, %s100
      %p107 = scmp.eq.s32.totalorder %s27, 1
      %p108 = por %p106, %p107
      %p109 = scmp.ne.s32.totalorder %s100, %s101
      %p110 = scmp.eq.s32.totalorder %s27, 0
      %p111 = por %p109, %p110
      %p112 = scmp.ne.s32.totalorder %s100, %s101
      %p113 = scmp.eq.s32.totalorder %s28, 1
      %p114 = por %p112, %p113
      %p116 = scmp.ne.s32.totalorder %s101, %s115
      %p117 = scmp.eq.s32.totalorder %s28, 0
      %p118 = por %p116, %p117
      %s120 = sadd.s32 %s119, 1
      %p123 = scmp.eq.s32.totalorder %s22, 1
      %p124 = scmp.ne.s32.totalorder %s119, %s121
      %p125 = scmp.eq.s32.totalorder %s22, 0
      %p126 = por %p124, %p125
      %p127 = scmp.ne.s32.totalorder %s119, %s121
      %p128 = scmp.eq.s32.totalorder %s27, 1
      %p129 = por %p127, %p128
      %p130 = scmp.ne.s32.totalorder %s121, %s122
      %p131 = scmp.eq.s32.totalorder %s27, 0
      %p132 = por %p130, %p131
      %p133 = scmp.ne.s32.totalorder %s121, %s122
      %p134 = scmp.eq.s32.totalorder %s28, 1
      %p135 = por %p133, %p134
      %p137 = scmp.ne.s32.totalorder %s122, %s136
      %p138 = scmp.eq.s32.totalorder %s28, 0
      %p139 = por %p137, %p138
      %s141 = sadd.s32 %s140, 1
      %p144 = scmp.eq.s32.totalorder %s22, 1
      %p145 = scmp.ne.s32.totalorder %s140, %s142
      %p146 = scmp.eq.s32.totalorder %s22, 0
      %p147 = por %p145, %p146
      %p148 = scmp.ne.s32.totalorder %s140, %s142
      %p149 = scmp.eq.s32.totalorder %s27, 1
      %p150 = por %p148, %p149
      %p151 = scmp.ne.s32.totalorder %s142, %s143
      %p152 = scmp.eq.s32.totalorder %s27, 0
      %p153 = por %p151, %p152
      %p154 = scmp.ne.s32.totalorder %s142, %s143
      %p155 = scmp.eq.s32.totalorder %s28, 1
      %p156 = por %p154, %p155
      %p158 = scmp.ne.s32.totalorder %s143, %s157
      %p159 = scmp.eq.s32.totalorder %s28, 0
      %p160 = por %p158, %p159
      %s162 = sadd.s32 %s161, 1
      %p165 = scmp.eq.s32.totalorder %s22, 1
      %p166 = scmp.ne.s32.totalorder %s161, %s163
      %p167 = scmp.eq.s32.totalorder %s22, 0
      %p168 = por %p166, %p167
      %p169 = scmp.ne.s32.totalorder %s161, %s163
      %p170 = scmp.eq.s32.totalorder %s27, 1
      %p171 = por %p169, %p170
      %p172 = scmp.ne.s32.totalorder %s163, %s164
      %p173 = scmp.eq.s32.totalorder %s27, 0
      %p174 = por %p172, %p173
      %p175 = scmp.ne.s32.totalorder %s163, %s164
      %p176 = scmp.eq.s32.totalorder %s28, 1
      %p177 = por %p175, %p176
      %p179 = scmp.ne.s32.totalorder %s164, %s178
      %p180 = scmp.eq.s32.totalorder %s28, 0
      %p181 = por %p179, %p180
      %s183 = sadd.s32 %s182, 1
      %p186 = scmp.eq.s32.totalorder %s22, 1
      %p187 = scmp.ne.s32.totalorder %s182, %s184
      %p188 = scmp.eq.s32.totalorder %s22, 0
      %p189 = por %p187, %p188
      %p190 = scmp.ne.s32.totalorder %s182, %s184
      %p191 = scmp.eq.s32.totalorder %s27, 1
      %p192 = por %p190, %p191
      %p193 = scmp.ne.s32.totalorder %s184, %s185
      %p194 = scmp.eq.s32.totalorder %s27, 0
      %p195 = por %p193, %p194
      %p196 = scmp.ne.s32.totalorder %s184, %s185
      %p197 = scmp.eq.s32.totalorder %s28, 1
      %p198 = por %p196, %p197
      %p200 = scmp.ne.s32.totalorder %s185, %s199
      %p201 = scmp.eq.s32.totalorder %s28, 0
      %p202 = por %p200, %p201
      %s204 = sadd.s32 %s203, 1
      %p207 = scmp.eq.s32.totalorder %s22, 1
      %p208 = scmp.ne.s32.totalorder %s203, %s205
      %p209 = scmp.eq.s32.totalorder %s22, 0
      %p210 = por %p208, %p209
      %p211 = scmp.ne.s32.totalorder %s203, %s205
      %p212 = scmp.eq.s32.totalorder %s27, 1
      %p213 = por %p211, %p212
      %p214 = scmp.ne.s32.totalorder %s205, %s206
      %p215 = scmp.eq.s32.totalorder %s27, 0
      %p216 = por %p214, %p215
      %p217 = scmp.ne.s32.totalorder %s205, %s206
      %p218 = scmp.eq.s32.totalorder %s28, 1
      %p219 = por %p217, %p218
      %p221 = scmp.ne.s32.totalorder %s206, %s220
      %p222 = scmp.eq.s32.totalorder %s28, 0
      %p223 = por %p221, %p222
      %s225 = sadd.s32 %s224, 1
      %p228 = scmp.eq.s32.totalorder %s22, 1
      %p229 = scmp.ne.s32.totalorder %s224, %s226
      %p230 = scmp.eq.s32.totalorder %s22, 0
      %p231 = por %p229, %p230
      %p232 = scmp.ne.s32.totalorder %s224, %s226
      %p233 = scmp.eq.s32.totalorder %s27, 1
      %p234 = por %p232, %p233
      %p235 = scmp.ne.s32.totalorder %s226, %s227
      %p236 = scmp.eq.s32.totalorder %s27, 0
      %p237 = por %p235, %p236
      %p238 = scmp.ne.s32.totalorder %s226, %s227
      %p239 = scmp.eq.s32.totalorder %s28, 1
      %p240 = por %p238, %p239
      %p242 = scmp.ne.s32.totalorder %s227, %s241
      %p243 = scmp.eq.s32.totalorder %s28, 0
      %p244 = por %p242, %p243
      %s246 = sadd.s32 %s245, 1
      %p249 = scmp.eq.s32.totalorder %s22, 1
      %p250 = scmp.ne.s32.totalorder %s245, %s247
      %p251 = scmp.eq.s32.totalorder %s22, 0
      %p252 = por %p250, %p251
      %p253 = scmp.ne.s32.totalorder %s245, %s247
      %p254 = scmp.eq.s32.totalorder %s27, 1
      %p255 = por %p253, %p254
      %p256 = scmp.ne.s32.totalorder %s247, %s248
      %p257 = scmp.eq.s32.totalorder %s27, 0
      %p258 = por %p256, %p257
      %p259 = scmp.ne.s32.totalorder %s247, %s248
      %p260 = scmp.eq.s32.totalorder %s28, 1
      %p261 = por %p259, %p260
      %p263 = scmp.ne.s32.totalorder %s248, %s262
      %p264 = scmp.eq.s32.totalorder %s28, 0
      %p265 = por %p263, %p264
      %s267 = sadd.s32 %s266, 1
      %p270 = scmp.eq.s32.totalorder %s22, 1
      %p271 = scmp.ne.s32.totalorder %s266, %s268
      %p272 = scmp.eq.s32.totalorder %s22, 0
      %p273 = por %p271, %p272
      %p274 = scmp.ne.s32.totalorder %s266, %s268
      %p275 = scmp.eq.s32.totalorder %s27, 1
      %p276 = por %p274, %p275
      %p277 = scmp.ne.s32.totalorder %s268, %s269
      %p278 = scmp.eq.s32.totalorder %s27, 0
      %p279 = por %p277, %p278
      %p280 = scmp.ne.s32.totalorder %s268, %s269
      %p281 = scmp.eq.s32.totalorder %s28, 1
      %p282 = por %p280, %p281
      %p284 = scmp.ne.s32.totalorder %s269, %s283
      %p285 = scmp.eq.s32.totalorder %s28, 0
      %p286 = por %p284, %p285
      %s288 = sadd.s32 %s287, 1
      %p291 = scmp.eq.s32.totalorder %s22, 1
      %p292 = scmp.ne.s32.totalorder %s287, %s289
      %p293 = scmp.eq.s32.totalorder %s22, 0
      %p294 = por %p292, %p293
      %p295 = scmp.ne.s32.totalorder %s287, %s289
      %p296 = scmp.eq.s32.totalorder %s27, 1
      %p297 = por %p295, %p296
      %p298 = scmp.ne.s32.totalorder %s289, %s290
      %p299 = scmp.eq.s32.totalorder %s27, 0
      %p300 = por %p298, %p299
      %p301 = scmp.ne.s32.totalorder %s289, %s290
      %p302 = scmp.eq.s32.totalorder %s28, 1
      %p303 = por %p301, %p302
      %p305 = scmp.ne.s32.totalorder %s290, %s304
      %p306 = scmp.eq.s32.totalorder %s28, 0
      %p307 = por %p305, %p306
      %s308 = ssub.s32 %s22, %s29
      %p309 = scmp.eq.s32.totalorder %s308, 0
      %s311 = sadd.s32 %s310, 1
      %s312 = scalar_select %p309, %s310, %s311
      %p315 = pneg %p309
      %p316 = scmp.eq.s32.totalorder %s22, 1
      %p317 = por %p315, %p316
      %p318 = scmp.ne.s32.totalorder %s310, %s313
      %p319 = scmp.eq.s32.totalorder %s22, 0
      %p320 = por %p318, %p319
      %p321 = scmp.ne.s32.totalorder %s310, %s313
      %p322 = scmp.eq.s32.totalorder %s27, 1
      %p323 = por %p321, %p322
      %p324 = scmp.ne.s32.totalorder %s313, %s314
      %p325 = scmp.eq.s32.totalorder %s27, 0
      %p326 = por %p324, %p325
      %p327 = scmp.ne.s32.totalorder %s313, %s314
      %p328 = scmp.eq.s32.totalorder %s28, 1
      %p329 = por %p327, %p328
      %p331 = scmp.ne.s32.totalorder %s314, %s330
      %p332 = scmp.eq.s32.totalorder %s28, 0
      %p333 = por %p331, %p332
      %p334 = scmp.le.s32.totalorder 1, %s22
      %p335 = scmp.lt.s32.totalorder %s22, 3
      %p336 = pnand %p334, %p335
      %p337 = pneg %p336
      // Predicated region
      $region9: #{tpu_custom_call.1} parent=5 // pred_check
        _
      $region10: #{tpu_custom_call.1} parent=5 // pred_check_branch
        %339 = sbr.rel (%p336) target = $region12
      $region11: #{tpu_custom_call.1} parent=5 // pred_region
        %s340 = ssub.s32 %s22, 1
        // Predicated region
        $region13: #{tpu_custom_call.1} parent=11 // pred_check
          %p341 = pneg %p69
        $region14: #{tpu_custom_call.1} parent=11 // pred_check_branch
          %343 = sbr.rel (%p341) target = $region16
        $region15: #{tpu_custom_call.1} parent=11 // pred_region
          _
        $region16: #{tpu_custom_call.1} parent=11 // pred_fallthru
          _
        // Predicated region
        $region17: #{tpu_custom_call.1} parent=11 // pred_check
          %p344 = pneg %p90
        $region18: #{tpu_custom_call.1} parent=11 // pred_check_branch
          %346 = sbr.rel (%p344) target = $region20
        $region19: #{tpu_custom_call.1} parent=11 // pred_region
          _
        $region20: #{tpu_custom_call.1} parent=11 // pred_fallthru
          _
        // Predicated region
        $region21: #{tpu_custom_call.1} parent=11 // pred_check
          %p347 = pneg %p111
        $region22: #{tpu_custom_call.1} parent=11 // pred_check_branch
          %349 = sbr.rel (%p347) target = $region24
        $region23: #{tpu_custom_call.1} parent=11 // pred_region
          _
        $region24: #{tpu_custom_call.1} parent=11 // pred_fallthru
          _
        // Predicated region
        $region25: #{tpu_custom_call.1} parent=11 // pred_check
          %p350 = pneg %p132
        $region26: #{tpu_custom_call.1} parent=11 // pred_check_branch
          %352 = sbr.rel (%p350) target = $region28
        $region27: #{tpu_custom_call.1} parent=11 // pred_region
          _
        $region28: #{tpu_custom_call.1} parent=11 // pred_fallthru
          _
        // Predicated region
        $region29: #{tpu_custom_call.1} parent=11 // pred_check
          %p353 = pneg %p153
        $region30: #{tpu_custom_call.1} parent=11 // pred_check_branch
          %355 = sbr.rel (%p353) target = $region32
        $region31: #{tpu_custom_call.1} parent=11 // pred_region
          _
        $region32: #{tpu_custom_call.1} parent=11 // pred_fallthru
          _
        // Predicated region
        $region33: #{tpu_custom_call.1} parent=11 // pred_check
          %p356 = pneg %p174
        $region34: #{tpu_custom_call.1} parent=11 // pred_check_branch
          %358 = sbr.rel (%p356) target = $region36
        $region35: #{tpu_custom_call.1} parent=11 // pred_region
          _
        $region36: #{tpu_custom_call.1} parent=11 // pred_fallthru
          _
        // Predicated region
        $region37: #{tpu_custom_call.1} parent=11 // pred_check
          %p359 = pneg %p195
        $region38: #{tpu_custom_call.1} parent=11 // pred_check_branch
          %361 = sbr.rel (%p359) target = $region40
        $region39: #{tpu_custom_call.1} parent=11 // pred_region
          _
        $region40: #{tpu_custom_call.1} parent=11 // pred_fallthru
          _
        // Predicated region
        $region41: #{tpu_custom_call.1} parent=11 // pred_check
          %p362 = pneg %p216
        $region42: #{tpu_custom_call.1} parent=11 // pred_check_branch
          %364 = sbr.rel (%p362) target = $region44
        $region43: #{tpu_custom_call.1} parent=11 // pred_region
          _
        $region44: #{tpu_custom_call.1} parent=11 // pred_fallthru
          _
        // Predicated region
        $region45: #{tpu_custom_call.1} parent=11 // pred_check
          %p365 = pneg %p237
        $region46: #{tpu_custom_call.1} parent=11 // pred_check_branch
          %367 = sbr.rel (%p365) target = $region48
        $region47: #{tpu_custom_call.1} parent=11 // pred_region
          _
        $region48: #{tpu_custom_call.1} parent=11 // pred_fallthru
          _
        // Predicated region
        $region49: #{tpu_custom_call.1} parent=11 // pred_check
          %p368 = pneg %p258
        $region50: #{tpu_custom_call.1} parent=11 // pred_check_branch
          %370 = sbr.rel (%p368) target = $region52
        $region51: #{tpu_custom_call.1} parent=11 // pred_region
          _
        $region52: #{tpu_custom_call.1} parent=11 // pred_fallthru
          _
        // Predicated region
        $region53: #{tpu_custom_call.1} parent=11 // pred_check
          %p371 = pneg %p279
        $region54: #{tpu_custom_call.1} parent=11 // pred_check_branch
          %373 = sbr.rel (%p371) target = $region56
        $region55: #{tpu_custom_call.1} parent=11 // pred_region
          _
        $region56: #{tpu_custom_call.1} parent=11 // pred_fallthru
          _
        // Predicated region
        $region57: #{tpu_custom_call.1} parent=11 // pred_check
          %p374 = pneg %p300
        $region58: #{tpu_custom_call.1} parent=11 // pred_check_branch
          %376 = sbr.rel (%p374) target = $region60
        $region59: #{tpu_custom_call.1} parent=11 // pred_region
          _
        $region60: #{tpu_custom_call.1} parent=11 // pred_fallthru
          _
      $region12: #{tpu_custom_call.1} parent=5 // pred_fallthru
        _
      %p377 = scmp.lt.s32.totalorder %s22, 2
      // Predicated region
      $region61: #{tpu_custom_call.1} parent=5 // pred_check
        %p378 = pneg %p377
      $region62: #{tpu_custom_call.1} parent=5 // pred_check_branch
        %380 = sbr.rel (%p378) target = $region64
      $region63: #{tpu_custom_call.1} parent=5 // pred_region
        // Predicated region
        $region65: #{tpu_custom_call.1} parent=63 // pred_check
          %p381 = pneg %p42
        $region66: #{tpu_custom_call.1} parent=63 // pred_check_branch
          %383 = sbr.rel (%p381) target = $region68
        $region67: #{tpu_custom_call.1} parent=63 // pred_region
          %p384 = scmp.lt.s32.totalorder %s22, 1
          %s385 = scalar_select %p384, %s22, 1
          %s386 = smul.addr %s385, 8
          %s387 = scalar_lea.vmem %s0, %s386
        $region68: #{tpu_custom_call.1} parent=63 // pred_fallthru
          _
      $region64: #{tpu_custom_call.1} parent=5 // pred_fallthru
        _
      %p388 = scmp.le.s32.totalorder 1, %s22
      %p389 = scmp.lt.s32.totalorder %s22, 3
      %p390 = pnand %p388, %p389
      %p391 = pneg %p390
      // Predicated region
      $region69: #{tpu_custom_call.1} parent=5 // pred_check
        _
      $region70: #{tpu_custom_call.1} parent=5 // pred_check_branch
        %393 = sbr.rel (%p390) target = $region72
      $region71: #{tpu_custom_call.1} parent=5 // pred_region
        %s394 = ssub.s32 %s22, 1
        %p395 = scmp.lt.s32.totalorder %s27, 1
        %s396 = scalar_select %p395, %s27, 1
        %s397 = smul.addr %s396, 8
        %s398 = scalar_lea.vmem %s0, %s397
        %p399 = pneg %p48
        %p400 = pneg %p45
        %p401 = pneg %p69
        %p402 = pneg %p66
        %p403 = pneg %p90
        %p404 = pneg %p87
        %p405 = pneg %p111
        %p406 = pneg %p108
        %p407 = pneg %p132
        %p408 = pneg %p129
        %p409 = pneg %p153
        %p410 = pneg %p150
        %p411 = pneg %p174
        %p412 = pneg %p171
        %p413 = pneg %p195
        %p414 = pneg %p192
        %p415 = pneg %p216
        %p416 = pneg %p213
        %p417 = pneg %p237
        %p418 = pneg %p234
        %p419 = pneg %p258
        %p420 = pneg %p255
        %p421 = pneg %p279
        %p422 = pneg %p276
        %p423 = pneg %p300
        %p424 = pneg %p297
        %p425 = pneg %p326
        %p426 = pneg %p323
        %s427 = sand.u32 %s313, 1
        %s428 = scalar_lea.sflag [#allocation3], %s427
        %s429 = sand.u32 %s313, 1
        %s430 = smul.addr %s429, 8
        %s431 = scalar_lea.vmem [#allocation2], %s430
        %p432 = scmp.lt.s32.totalorder %s27, 1
        %s433 = scalar_select %p432, %s27, 1
        %s434 = smul.addr %s433, 8
        %s435 = scalar_lea.vmem %s0, %s434
        %v437 = vld [vmem:[%s435] sm:$0xff]
        %v438 = vld [vmem:[%s1] sm:$0x1]
        %v439 = vld [vmem:[%s2] sm:$0x1]
        %vm440 = vcmask 261120
        %v441 = vsel %vm440, %v437, 0.0
        %442 = vadd.xlane.f32.xlu0 %v441
        %v443 = vpop.xlane.xlu0 %442
        %v444 = vrcp.pop 32.0
        %v445 = vmul.f32 32.0, %v444
        %v446 = vsub.f32 1.0, %v445
        %v447 = vmul.f32 %v444, %v446
        %v448 = vadd.f32 %v444, %v447
        %vm449 = vweird.f32 %v444
        %v450 = vsel %vm449, %v444, %v448
        %v451 = vmul.f32 %v443, %v450
        %v452 = vsub.f32 %v437, %v451
        %v453 = vmul.f32 %v452, %v452
        %v454 = vsel %vm440, %v453, 0.0
        %455 = vadd.xlane.f32.xlu0 %v454
        %v456 = vpop.xlane.xlu0 %455
        %v457 = vmul.f32 %v456, %v450
        %v458 = vadd.f32 %v457, 1e-05
        %v459 = vrsqrt.pop %v458
        %v460 = vmul.f32 %v459, %v458
        %v461 = vmul.f32 %v460, %v459
        %v462 = vmul.f32 0.5, %v461
        %v463 = vsub.f32 1.5, %v462
        %v464 = vmul.f32 %v459, %v463
        %vm465 = vweird.f32 %v458
        %vm466 = vweird.f32 %v459
        %vm467 = vmor %vm465, %vm466
        %v468 = vsel %vm467, %v459, %v464
        %v469 = vmul.f32 %v452, %v468
        %v471 = vperm.slane %v438, 0
        %v473 = vmul.f32 %v469, %v471
        %v475 = vperm.slane %v439, 0
        %v477 = vadd.f32 %v473, %v475
        %v478 = vpack.c.bf16 %v477, %v477
        %v479 = vld [vmem:[%s3] sm:$0xf]
        %v480 = vld [vmem:[%s3 + $0x4] sm:$0xf]
        %v481 = vld [vmem:[%s3 + $0x8] sm:$0xf]
        %v482 = vld [vmem:[%s3 + $0xc] sm:$0xf]
        %v483 = vld [vmem:[%s4] sm:$0x1]
        %v485 = vperm.slane %v483, 0
        %v491 = vunpack.c.l.b16 %v479
        %v492 = vunpack.c.l.b16 %v480
        %v493 = vunpack.c.l.b16 %v481
        %v494 = vunpack.c.l.b16 %v482
        %v495 = vpack.c.b16 %v492, %v491
        %v496 = vpack.c.b16 %v494, %v493
        %v500 = vsel %vm440, %v478, 0
        %502 = vmatpush.bf16.msra.mxu0 0
        %503 = vmatpush.bf16.msra.mxu0 0
        %504 = vmatpush.bf16.msra.mxu0 0
        %505 = vmatpush.bf16.msra.mxu0 0
        %506 = vmatpush.bf16.msra.mxu0 0
        %507 = vmatpush.bf16.msra.mxu0 0
        %508 = vmatpush.bf16.msra.mxu0 %v496
        %509 = vmatpush.bf16.msra.mxu0 %v495
        %510 = vmatmul.bf16.gmra.mxu0 %v500
        %v511 = vpop.f32.mrf.mxu0
        %v512 = vadd.f32 %v485, %v511
        %v513 = vpop.f32.mrf.mxu0
        %514 = vdwg.mxu0
        %516 = vrot.lane.b32.xlu0 %v512, 120
        %v517 = vpop.permute.xlu0 %516
        %519 = vrot.lane.b32.xlu0 %v512, 112
        %v520 = vpop.permute.xlu0 %519
        %522 = vrot.lane.b32.xlu0 %v512, 104
        %v523 = vpop.permute.xlu0 %522
        %v525 = vpack.c.bf16 %v512, %v512
        %v526 = vpack.c.bf16 %v517, %v517
        %v527 = vpack.c.bf16 %v520, %v520
        %v528 = vpack.c.bf16 %v523, %v523
        %v530 = vunpack.c.l.b16 %v525
        %v531 = vpack.c.b16 %v530, %v530
        %532 = vrot.lane.b32.xlu0 %v531, 96
        %v533 = vpop.permute.xlu0 %532
        %vm534 = vcmask 64512
        %v536 = vsel %vm534, %v525, 0
        %v539 = vsel %vm534, %v533, 0
        %541 = vmatpush.bf16.xpose.msra.mxu0 0
        %542 = vmatpush.bf16.xpose.msra.mxu0 0
        %543 = vmatpush.bf16.xpose.msra.mxu0 0
        %544 = vmatpush.bf16.xpose.msra.mxu0 0
        %545 = vmatpush.bf16.xpose.msra.mxu0 0
        %546 = vmatpush.bf16.xpose.msra.mxu0 0
        %547 = vmatpush.bf16.xpose.msra.mxu0 0
        %548 = vmatpush.bf16.xpose.msra.mxu0 %v539
        %549 = vmatmul.bf16.gmra.mxu0 %v536
        %v550 = vpop.f32.mrf.mxu0
        %v551 = vadd.f32 0.0, %v550
        %v552 = vpop.f32.mrf.mxu0
        %553 = vdwg.mxu0
        %v555 = vunpack.c.l.b16 %v526
        %v556 = vpack.c.b16 %v555, %v555
        %557 = vrot.lane.b32.xlu0 %v556, 96
        %v558 = vpop.permute.xlu0 %557
        %v560 = vsel %vm534, %v526, 0
        %v563 = vsel %vm534, %v558, 0
        %565 = vmatpush.bf16.xpose.msra.mxu0 0
        %566 = vmatpush.bf16.xpose.msra.mxu0 0
        %567 = vmatpush.bf16.xpose.msra.mxu0 0
        %568 = vmatpush.bf16.xpose.msra.mxu0 0
        %569 = vmatpush.bf16.xpose.msra.mxu0 0
        %570 = vmatpush.bf16.xpose.msra.mxu0 0
        %571 = vmatpush.bf16.xpose.msra.mxu0 0
        %572 = vmatpush.bf16.xpose.msra.mxu0 %v563
        %573 = vmatmul.bf16.gmra.mxu0 %v560
        %v574 = vpop.f32.mrf.mxu0
        %v575 = vadd.f32 0.0, %v574
        %v576 = vpop.f32.mrf.mxu0
        %577 = vdwg.mxu0
        %v579 = vunpack.c.l.b16 %v527
        %v580 = vpack.c.b16 %v579, %v579
        %581 = vrot.lane.b32.xlu0 %v580, 96
        %v582 = vpop.permute.xlu0 %581
        %v584 = vsel %vm534, %v527, 0
        %v587 = vsel %vm534, %v582, 0
        %589 = vmatpush.bf16.xpose.msra.mxu0 0
        %590 = vmatpush.bf16.xpose.msra.mxu0 0
        %591 = vmatpush.bf16.xpose.msra.mxu0 0
        %592 = vmatpush.bf16.xpose.msra.mxu0 0
        %593 = vmatpush.bf16.xpose.msra.mxu0 0
        %594 = vmatpush.bf16.xpose.msra.mxu0 0
        %595 = vmatpush.bf16.xpose.msra.mxu0 0
        %596 = vmatpush.bf16.xpose.msra.mxu0 %v587
        %597 = vmatmul.bf16.gmra.mxu0 %v584
        %v598 = vpop.f32.mrf.mxu0
        %v599 = vadd.f32 0.0, %v598
        %v600 = vpop.f32.mrf.mxu0
        %601 = vdwg.mxu0
        %v603 = vunpack.c.l.b16 %v528
        %v604 = vpack.c.b16 %v603, %v603
        %605 = vrot.lane.b32.xlu0 %v604, 96
        %v606 = vpop.permute.xlu0 %605
        %v608 = vsel %vm534, %v528, 0
        %v611 = vsel %vm534, %v606, 0
        %613 = vmatpush.bf16.xpose.msra.mxu0 0
        %614 = vmatpush.bf16.xpose.msra.mxu0 0
        %615 = vmatpush.bf16.xpose.msra.mxu0 0
        %616 = vmatpush.bf16.xpose.msra.mxu0 0
        %617 = vmatpush.bf16.xpose.msra.mxu0 0
        %618 = vmatpush.bf16.xpose.msra.mxu0 0
        %619 = vmatpush.bf16.xpose.msra.mxu0 0
        %620 = vmatpush.bf16.xpose.msra.mxu0 %v611
        %621 = vmatmul.bf16.gmra.mxu0 %v608
        %v622 = vpop.f32.mrf.mxu0
        %v623 = vadd.f32 0.0, %v622
        %v624 = vpop.f32.mrf.mxu0
        %625 = vdwg.mxu0
        %v626 = vsel %vm534, %v551, -inf
        %627 = vmax.xlane.f32.xlu0 %v626
        %v628 = vpop.xlane.xlu0 %627
        %v629 = vsel %vm534, %v575, -inf
        %630 = vmax.xlane.f32.xlu0 %v629
        %v631 = vpop.xlane.xlu0 %630
        %v632 = vsel %vm534, %v599, -inf
        %633 = vmax.xlane.f32.xlu0 %v632
        %v634 = vpop.xlane.xlu0 %633
        %v635 = vsel %vm534, %v623, -inf
        %636 = vmax.xlane.f32.xlu0 %v635
        %v637 = vpop.xlane.xlu0 %636
        %v638 = vsub.f32 %v551, %v628
        %v639 = vsub.f32 %v575, %v631
        %v640 = vsub.f32 %v599, %v634
        %v641 = vsub.f32 %v623, %v637
        %v642 = vmul.f32 %v638, 1.442695
        %v643 = vpow.pop %v642
        %v644 = vmul.f32 %v639, 1.442695
        %v645 = vpow.pop %v644
        %v646 = vmul.f32 %v640, 1.442695
        %v647 = vpow.pop %v646
        %v648 = vmul.f32 %v641, 1.442695
        %v649 = vpow.pop %v648
        %v650 = vsel %vm534, %v643, 0.0
        %651 = vadd.xlane.f32.xlu0 %v650
        %v652 = vpop.xlane.xlu0 %651
        %v653 = vsel %vm534, %v645, 0.0
        %654 = vadd.xlane.f32.xlu0 %v653
        %v655 = vpop.xlane.xlu0 %654
        %v656 = vsel %vm534, %v647, 0.0
        %657 = vadd.xlane.f32.xlu0 %v656
        %v658 = vpop.xlane.xlu0 %657
        %v659 = vsel %vm534, %v649, 0.0
        %660 = vadd.xlane.f32.xlu0 %v659
        %v661 = vpop.xlane.xlu0 %660
        %v662 = vrcp.pop %v652
        %v663 = vrcp.pop %v655
        %v664 = vrcp.pop %v658
        %v665 = vrcp.pop %v661
        %v666 = vmul.f32 %v643, %v662
        %v667 = vmul.f32 %v645, %v663
        %v668 = vmul.f32 %v647, %v664
        %v669 = vmul.f32 %v649, %v665
        %v670 = vpack.c.bf16 %v666, %v666
        %v671 = vpack.c.bf16 %v667, %v667
        %v672 = vpack.c.bf16 %v668, %v668
        %v673 = vpack.c.bf16 %v669, %v669
        %674 = vrot.lane.b32.xlu0 %v531, 64
        %v675 = vpop.permute.xlu0 %674
        %v677 = vsel %vm534, %v670, 0
        %vm679 = vcmask 1043456
        %v681 = vsel %vm679, %v675, 0
        %683 = vmatpush.bf16.msra.mxu0 0
        %684 = vmatpush.bf16.msra.mxu0 0
        %685 = vmatpush.bf16.msra.mxu0 0
        %686 = vmatpush.bf16.msra.mxu0 0
        %687 = vmatpush.bf16.msra.mxu0 0
        %688 = vmatpush.bf16.msra.mxu0 0
        %689 = vmatpush.bf16.msra.mxu0 0
        %690 = vmatpush.bf16.msra.mxu0 %v681
        %691 = vmatmul.bf16.gmra.mxu0 %v677
        %v692 = vpop.f32.mrf.mxu0
        %v693 = vadd.f32 0.0, %v692
        %v694 = vpop.f32.mrf.mxu0
        %695 = vdwg.mxu0
        %696 = vrot.lane.b32.xlu0 %v556, 64
        %v697 = vpop.permute.xlu0 %696
        %v699 = vsel %vm534, %v671, 0
        %v702 = vsel %vm679, %v697, 0
        %704 = vmatpush.bf16.msra.mxu0 0
        %705 = vmatpush.bf16.msra.mxu0 0
        %706 = vmatpush.bf16.msra.mxu0 0
        %707 = vmatpush.bf16.msra.mxu0 0
        %708 = vmatpush.bf16.msra.mxu0 0
        %709 = vmatpush.bf16.msra.mxu0 0
        %710 = vmatpush.bf16.msra.mxu0 0
        %711 = vmatpush.bf16.msra.mxu0 %v702
        %712 = vmatmul.bf16.gmra.mxu0 %v699
        %v713 = vpop.f32.mrf.mxu0
        %v714 = vadd.f32 0.0, %v713
        %v715 = vpop.f32.mrf.mxu0
        %716 = vdwg.mxu0
        %717 = vrot.lane.b32.xlu0 %v580, 64
        %v718 = vpop.permute.xlu0 %717
        %v720 = vsel %vm534, %v672, 0
        %v723 = vsel %vm679, %v718, 0
        %725 = vmatpush.bf16.msra.mxu0 0
        %726 = vmatpush.bf16.msra.mxu0 0
        %727 = vmatpush.bf16.msra.mxu0 0
        %728 = vmatpush.bf16.msra.mxu0 0
        %729 = vmatpush.bf16.msra.mxu0 0
        %730 = vmatpush.bf16.msra.mxu0 0
        %731 = vmatpush.bf16.msra.mxu0 0
        %732 = vmatpush.bf16.msra.mxu0 %v723
        %733 = vmatmul.bf16.gmra.mxu0 %v720
        %v734 = vpop.f32.mrf.mxu0
        %v735 = vadd.f32 0.0, %v734
        %v736 = vpop.f32.mrf.mxu0
        %737 = vdwg.mxu0
        %738 = vrot.lane.b32.xlu0 %v604, 64
        %v739 = vpop.permute.xlu0 %738
        %v741 = vsel %vm534, %v673, 0
        %v744 = vsel %vm679, %v739, 0
        %746 = vmatpush.bf16.msra.mxu0 0
        %747 = vmatpush.bf16.msra.mxu0 0
        %748 = vmatpush.bf16.msra.mxu0 0
        %749 = vmatpush.bf16.msra.mxu0 0
        %750 = vmatpush.bf16.msra.mxu0 0
        %751 = vmatpush.bf16.msra.mxu0 0
        %752 = vmatpush.bf16.msra.mxu0 0
        %753 = vmatpush.bf16.msra.mxu0 %v744
        %754 = vmatmul.bf16.gmra.mxu0 %v741
        %v755 = vpop.f32.mrf.mxu0
        %v756 = vadd.f32 0.0, %v755
        %v757 = vpop.f32.mrf.mxu0
        %758 = vdwg.mxu0
        %760 = vrot.lane.b32.xlu0 %v714, 8
        %v761 = vpop.permute.xlu0 %760
        %764 = vrot.lane.b32.xlu0 %v735, 16
        %v765 = vpop.permute.xlu0 %764
        %768 = vrot.lane.b32.xlu0 %v756, 24
        %v769 = vpop.permute.xlu0 %768
        %v771 = vsel %vm534, %v693, %v761
        %vm772 = vcmask 130048
        %v773 = vsel %vm772, %v771, %v765
        %vm774 = vcmask 195584
        %v775 = vsel %vm774, %v773, %v769
        %v776 = vpack.c.bf16 %v775, %v775
        %v777 = vld [vmem:[%s5] sm:$0xf]
        %v778 = vld [vmem:[%s5 + $0x4] sm:$0xf]
        %v779 = vld [vmem:[%s5 + $0x8] sm:$0xf]
        %v780 = vld [vmem:[%s5 + $0xc] sm:$0xf]
        %v781 = vld [vmem:[%s6] sm:$0x1]
        %v783 = vperm.slane %v781, 0
        %v789 = vunpack.c.l.b16 %v777
        %v790 = vunpack.c.l.b16 %v778
        %v791 = vunpack.c.l.b16 %v779
        %v792 = vunpack.c.l.b16 %v780
        %v793 = vpack.c.b16 %v790, %v789
        %v794 = vpack.c.b16 %v792, %v791
        %v798 = vsel %vm440, %v776, 0
        %800 = vmatpush.bf16.msra.mxu0 0
        %801 = vmatpush.bf16.msra.mxu0 0
        %802 = vmatpush.bf16.msra.mxu0 0
        %803 = vmatpush.bf16.msra.mxu0 0
        %804 = vmatpush.bf16.msra.mxu0 0
        %805 = vmatpush.bf16.msra.mxu0 0
        %806 = vmatpush.bf16.msra.mxu0 %v794
        %807 = vmatpush.bf16.msra.mxu0 %v793
        %808 = vmatmul.bf16.gmra.mxu0 %v798
        %v809 = vpop.f32.mrf.mxu0
        %v810 = vadd.f32 %v783, %v809
        %v811 = vpop.f32.mrf.mxu0
        %812 = vdwg.mxu0
        %v813 = vadd.f32 %v437, %v810
        %v814 = vld [vmem:[%s7] sm:$0x1]
        %v815 = vld [vmem:[%s8] sm:$0x1]
        %v816 = vsel %vm440, %v813, 0.0
        %817 = vadd.xlane.f32.xlu0 %v816
        %v818 = vpop.xlane.xlu0 %817
        %v819 = vmul.f32 %v818, %v450
        %v820 = vsub.f32 %v813, %v819
        %v821 = vmul.f32 %v820, %v820
        %v822 = vsel %vm440, %v821, 0.0
        %823 = vadd.xlane.f32.xlu0 %v822
        %v824 = vpop.xlane.xlu0 %823
        %v825 = vmul.f32 %v824, %v450
        %v826 = vadd.f32 %v825, 1e-05
        %v827 = vrsqrt.pop %v826
        %v828 = vmul.f32 %v827, %v826
        %v829 = vmul.f32 %v828, %v827
        %v830 = vmul.f32 0.5, %v829
        %v831 = vsub.f32 1.5, %v830
        %v832 = vmul.f32 %v827, %v831
        %vm833 = vweird.f32 %v826
        %vm834 = vweird.f32 %v827
        %vm835 = vmor %vm833, %vm834
        %v836 = vsel %vm835, %v827, %v832
        %v837 = vmul.f32 %v820, %v836
        %v839 = vperm.slane %v814, 0
        %v841 = vmul.f32 %v837, %v839
        %v843 = vperm.slane %v815, 0
        %v845 = vadd.f32 %v841, %v843
        %v846 = vpack.c.bf16 %v845, %v845
        %v847 = vld [vmem:[%s9] sm:$0xf]
        %v848 = vld [vmem:[%s9 + $0x4] sm:$0xf]
        %v849 = vld [vmem:[%s9 + $0x8] sm:$0xf]
        %v850 = vld [vmem:[%s9 + $0xc] sm:$0xf]
        %v851 = vld [vmem:[%s10] sm:$0x1]
        %v853 = vperm.slane %v851, 0
        %v859 = vunpack.c.l.b16 %v847
        %v860 = vunpack.c.l.b16 %v848
        %v861 = vunpack.c.l.b16 %v849
        %v862 = vunpack.c.l.b16 %v850
        %v863 = vpack.c.b16 %v860, %v859
        %v864 = vpack.c.b16 %v862, %v861
        %v868 = vsel %vm440, %v846, 0
        %870 = vmatpush.bf16.msra.mxu0 0
        %871 = vmatpush.bf16.msra.mxu0 0
        %872 = vmatpush.bf16.msra.mxu0 0
        %873 = vmatpush.bf16.msra.mxu0 0
        %874 = vmatpush.bf16.msra.mxu0 0
        %875 = vmatpush.bf16.msra.mxu0 0
        %876 = vmatpush.bf16.msra.mxu0 %v864
        %877 = vmatpush.bf16.msra.mxu0 %v863
        %878 = vmatmul.bf16.gmra.mxu0 %v868
        %v879 = vpop.f32.mrf.mxu0
        %v880 = vadd.f32 %v853, %v879
        %v881 = vpop.f32.mrf.mxu0
        %882 = vdwg.mxu0
        %v883 = vmul.f32 %v880, 0.5
        %v884 = vmul.f32 %v880, 0.70710677
        %v885 = vmul.f32 %v884, %v884
        %v886 = vmin.f32 16.0, %v885
        %v887 = vmul.f32 %v886, 2.1237322e-06
        %v888 = vadd.f32 %v887, 0.00028619796
        %v889 = vmul.f32 %v886, %v888
        %v890 = vadd.f32 %v889, 0.0036580483
        %v891 = vmul.f32 %v886, %v890
        %v892 = vadd.f32 %v891, 0.05243302
        %v893 = vmul.f32 %v886, %v892
        %v894 = vadd.f32 %v893, 0.18741608
        %v895 = vmul.f32 %v886, %v894
        %v896 = vadd.f32 %v895, 1.1283791
        %v897 = vmul.f32 %v884, %v896
        %v898 = vmul.f32 %v886, 3.8918573e-05
        %v899 = vadd.f32 %v898, 0.001143296
        %v900 = vmul.f32 %v886, %v899
        %v901 = vadd.f32 %v900, 0.014752088
        %v902 = vmul.f32 %v886, %v901
        %v903 = vadd.f32 %v902, 0.112945676
        %v904 = vmul.f32 %v886, %v903
        %v905 = vadd.f32 %v904, 0.4994258
        %v906 = vmul.f32 %v886, %v905
        %v907 = vadd.f32 %v906, 1.0
        %v908 = vrcp.pop %v907
        %v909 = vmul.f32 %v907, %v908
        %v910 = vsub.f32 1.0, %v909
        %v911 = vmul.f32 %v908, %v910
        %v912 = vadd.f32 %v908, %v911
        %vm913 = vweird.f32 %v907
        %vm914 = vweird.f32 %v908
        %vm915 = vmor %vm913, %vm914
        %v916 = vsel %vm915, %v908, %v912
        %v917 = vand.u32 2147483647, %v907
        %vm918 = vcmp.eq.f32.partialorder %v917, 8.507059e+37
        %v919 = vand.u32 %v907, 2147483648
        %v920 = vor.u32 1.1754944e-38, %v919
        %v921 = vsel %vm918, %v920, %v916
        %v922 = vmul.f32 %v897, %v921
        %v923 = vmin.f32 %v922, 1.0
        %v924 = vmax.f32 %v923, -1.0
        %v925 = vadd.f32 %v924, 1.0
        %v926 = vmul.f32 %v883, %v925
        %v927 = vpack.c.bf16 %v926, %v926
        %v928 = vld [vmem:[%s11] sm:$0xf]
        %v929 = vld [vmem:[%s11 + $0x4] sm:$0xf]
        %v930 = vld [vmem:[%s11 + $0x8] sm:$0xf]
        %v931 = vld [vmem:[%s11 + $0xc] sm:$0xf]
        %v932 = vld [vmem:[%s11 + $0x10] sm:$0xf]
        %v933 = vld [vmem:[%s11 + $0x14] sm:$0xf]
        %v934 = vld [vmem:[%s11 + $0x18] sm:$0xf]
        %v935 = vld [vmem:[%s11 + $0x1c] sm:$0xf]
        %v936 = vld [vmem:[%s11 + $0x20] sm:$0xf]
        %v937 = vld [vmem:[%s11 + $0x24] sm:$0xf]
        %v938 = vld [vmem:[%s11 + $0x28] sm:$0xf]
        %v939 = vld [vmem:[%s11 + $0x2c] sm:$0xf]
        %v940 = vld [vmem:[%s11 + $0x30] sm:$0xf]
        %v941 = vld [vmem:[%s11 + $0x34] sm:$0xf]
        %v942 = vld [vmem:[%s11 + $0x38] sm:$0xf]
        %v943 = vld [vmem:[%s11 + $0x3c] sm:$0xf]
        %v944 = vld [vmem:[%s12] sm:$0x1]
        %v946 = vperm.slane %v944, 0
        %v964 = vunpack.c.l.b16 %v928
        %v965 = vunpack.c.l.b16 %v929
        %v966 = vunpack.c.l.b16 %v930
        %v967 = vunpack.c.l.b16 %v931
        %v968 = vunpack.c.l.b16 %v932
        %v969 = vunpack.c.l.b16 %v933
        %v970 = vunpack.c.l.b16 %v934
        %v971 = vunpack.c.l.b16 %v935
        %v972 = vunpack.c.l.b16 %v936
        %v973 = vunpack.c.l.b16 %v937
        %v974 = vunpack.c.l.b16 %v938
        %v975 = vunpack.c.l.b16 %v939
        %v976 = vunpack.c.l.b16 %v940
        %v977 = vunpack.c.l.b16 %v941
        %v978 = vunpack.c.l.b16 %v942
        %v979 = vunpack.c.l.b16 %v943
        %v980 = vpack.c.b16 %v965, %v964
        %v981 = vpack.c.b16 %v967, %v966
        %v982 = vpack.c.b16 %v969, %v968
        %v983 = vpack.c.b16 %v971, %v970
        %v984 = vpack.c.b16 %v973, %v972
        %v985 = vpack.c.b16 %v975, %v974
        %v986 = vpack.c.b16 %v977, %v976
        %v987 = vpack.c.b16 %v979, %v978
        %996 = vmatpush.bf16.msra.mxu0 %v987
        %997 = vmatpush.bf16.msra.mxu0 %v986
        %998 = vmatpush.bf16.msra.mxu0 %v985
        %999 = vmatpush.bf16.msra.mxu0 %v984
        %1000 = vmatpush.bf16.msra.mxu0 %v983
        %1001 = vmatpush.bf16.msra.mxu0 %v982
        %1002 = vmatpush.bf16.msra.mxu0 %v981
        %1003 = vmatpush.bf16.msra.mxu0 %v980
        %1004 = vmatmul.bf16.gmra.mxu0 %v927
        %v1005 = vpop.f32.mrf.mxu0
        %v1006 = vadd.f32 %v946, %v1005
        %v1007 = vpop.f32.mrf.mxu0
        %1008 = vdwg.mxu0
        %v1009 = vadd.f32 %v813, %v1006
        %1010 = vst.msk [vmem:[%s431] sm:$0xff] %vm440, %v1009
        %s1011 = sand.u32 %s313, 1
        %s1012 = scalar_lea.sflag [#allocation3], %s1011
        %s1013 = sand.u32 %s313, 1
        %s1014 = smul.addr %s1013, 8
        %s1015 = scalar_lea.vmem [#allocation2], %s1014
        // Predicated region
        $region73: #{tpu_custom_call.1} parent=71 // pred_check
          %p1016 = pneg %p323
        $region74: #{tpu_custom_call.1} parent=71 // pred_check_branch
          %1018 = sbr.rel (%p1016) target = $region76
        $region75: #{tpu_custom_call.1} parent=71 // pred_region
          %1020 = vsyncadd %s1012, 0
          %s1021 = smul.addr %s27, 8
          %s1022 = scalar_lea.hbm %s13, %s1021
          %s1024 = sshll.u32 %s1015, 4
          %s1025 = int_to_ptr.vmem [resolvable:$true] %s1024
          %s1026 = sshll.u32 %s1022, 4
          %s1027 = int_to_ptr.hbm [resolvable:$true] %s1026
          %1029 = dma.vmem_to_hbm [thread:$0]  %s1025, 128, %s1027, %s1012
        $region76: #{tpu_custom_call.1} parent=71 // pred_fallthru
          _
      $region72: #{tpu_custom_call.1} parent=5 // pred_fallthru
        _
      %p1030 = scmp.le.s32.totalorder 2, %s22
      // Predicated region
      $region77: #{tpu_custom_call.1} parent=5 // pred_check
        %p1031 = pneg %p1030
      $region78: #{tpu_custom_call.1} parent=5 // pred_check_branch
        %1033 = sbr.rel (%p1031) target = $region80
      $region79: #{tpu_custom_call.1} parent=5 // pred_region
        %s1034 = ssub.s32 %s22, 2
        // Predicated region
        $region81: #{tpu_custom_call.1} parent=79 // pred_check
          %p1035 = pneg %p329
        $region82: #{tpu_custom_call.1} parent=79 // pred_check_branch
          %1037 = sbr.rel (%p1035) target = $region84
        $region83: #{tpu_custom_call.1} parent=79 // pred_region
          %s1038 = sand.u32 %s314, 1
          %s1039 = scalar_lea.sflag [#allocation3], %s1038
          %s1040 = sand.u32 %s314, 1
          %s1041 = smul.addr %s1040, 8
          %s1042 = scalar_lea.vmem [#allocation2], %s1041
          %1044 = dma.done %s1039, 128
        $region84: #{tpu_custom_call.1} parent=79 // pred_fallthru
          _
      $region80: #{tpu_custom_call.1} parent=5 // pred_fallthru
        _
    $region6: #{tpu_custom_call.1} parent=1 // loop_footer
      %s26 = sadd.s32 1, %s22
    $region7: #{tpu_custom_call.1} parent=1 // loop_footer_branch
      %21 = sbr.rel target = $region3
    $region8: #{tpu_custom_call.1} parent=1 // loop_exit
      _
    %1045 = vsyncpa [#allocation3], 1
    %s1046 = scalar_lea.sflag [#allocation3], 1
    %1047 = vsyncpa %s1046, 1

</llo_original>
